<compile_context>
chip_gen: v7x
topology: tpu7x:2x2x1
jax: 0.10.0
libtpu: 0.0.40
codegen_flags: <defaults>
</compile_context>

<pallas_src>
import functools
import math

import jax
import jax.numpy as jnp
from jax.experimental import pallas as pl
from jax.experimental.pallas import tpu as pltpu


@functools.lru_cache(maxsize=None)
def _vmem_limit_bytes():
    """~75% of physical VMEM (96 MiB on v5e/v6e, 48 MiB on v7x); safe fallback 48 MiB."""
    cap = 64 * 1024 * 1024
    try:
        cap = int(pltpu.get_tpu_info().vmem_capacity_bytes)
    except Exception:
        pass
    return int(min(cap * 3 // 4, 112 * 1024 * 1024))


def _pick_tile(dim, candidates):
    for c in candidates:
        if dim % c == 0:
            return c
    return dim


# ---------------------------------------------------------------------------
# dense: y = act(x @ W + b)
# ---------------------------------------------------------------------------
def _dense_kernel(x_ref, w_ref, b_ref, o_ref, *, activation):
    y = jnp.dot(x_ref[...], w_ref[...], preferred_element_type=jnp.float32)
    y = y + b_ref[...]
    if activation == "gelu":
        # TODO(synk): HF BERT uses exact erf GELU; tanh approximation used here.
        y = jax.nn.gelu(y, approximate=True)
    elif activation == "tanh":
        y = jnp.tanh(y)
    o_ref[...] = y.astype(o_ref.dtype)


def dense(x, w, b, activation="none"):
    M, K = x.shape
    _, N = w.shape
    vmem = _vmem_limit_bytes()
    budget = int(vmem * 0.85)

    # Keep the whole weight VMEM-resident (loaded from HBM once) when it fits.
    if 2 * K * N * 2 <= budget // 3:
        tn = N
    else:
        tn = _pick_tile(N, (2048, 1536, 1024, 768, 512, 384, 256, 128))

    def fits(tm):
        need = 2 * 2 * (tm * K + tm * tn) + 2 * 2 * K * tn + 2 * 4 * tn
        return need <= budget

    tm = next((c for c in (1024, 512, 256, 128, 64, 32, 16, 8)
               if M % c == 0 and fits(c)), M)

    kern = functools.partial(_dense_kernel, activation=activation)
    out_shape = jax.ShapeDtypeStruct((M, N), jnp.bfloat16)
    b2 = b.reshape(1, N)

    if tn == N:
        # 1-D grid over rows; weight/bias block index is constant -> DMA'd once.
        return pl.pallas_call(
            kern, out_shape=out_shape,
            grid=(M // tm,),
            in_specs=[pl.BlockSpec((tm, K), lambda i: (i, 0)),
                      pl.BlockSpec((K, N), lambda i: (0, 0)),
                      pl.BlockSpec((1, N), lambda i: (0, 0))],
            out_specs=pl.BlockSpec((tm, N), lambda i: (i, 0)),
            compiler_params=pltpu.CompilerParams(
                dimension_semantics=("parallel",),
                vmem_limit_bytes=vmem),
        )(x, w, b2)

    gm, gn = M // tm, N // tn
    cp = pltpu.CompilerParams(dimension_semantics=("parallel", "parallel"),
                              vmem_limit_bytes=vmem)
    if 2 * K * N * (gm - 1) >= 2 * M * K * (gn - 1):
        # Weight re-reads dominate: keep the weight block constant along the
        # innermost axis so each weight column-block is streamed exactly once.
        return pl.pallas_call(
            kern, out_shape=out_shape,
            grid=(gn, gm),
            in_specs=[pl.BlockSpec((tm, K), lambda j, i: (i, 0)),
                      pl.BlockSpec((K, tn), lambda j, i: (0, j)),
                      pl.BlockSpec((1, tn), lambda j, i: (0, j))],
            out_specs=pl.BlockSpec((tm, tn), lambda j, i: (i, j)),
            compiler_params=cp,
        )(x, w, b2)
    return pl.pallas_call(
        kern, out_shape=out_shape,
        grid=(gm, gn),
        in_specs=[pl.BlockSpec((tm, K), lambda i, j: (i, 0)),
                  pl.BlockSpec((K, tn), lambda i, j: (0, j)),
                  pl.BlockSpec((1, tn), lambda i, j: (0, j))],
        out_specs=pl.BlockSpec((tm, tn), lambda i, j: (i, j)),
        compiler_params=cp,
    )(x, w, b2)


# ---------------------------------------------------------------------------
# dense + residual add + LayerNorm fused epilogue (attn-out / FFN-out paths)
# ---------------------------------------------------------------------------
def _dense_res_ln_kernel(x_ref, w_ref, b_ref, r_ref, g_ref, bt_ref, o_ref, *, eps):
    y = jnp.dot(x_ref[...], w_ref[...], preferred_element_type=jnp.float32)
    y = y + b_ref[...] + r_ref[...].astype(jnp.float32)
    mean = jnp.mean(y, axis=-1, keepdims=True)
    var = jnp.mean(jnp.square(y - mean), axis=-1, keepdims=True)
    y = (y - mean) * jax.lax.rsqrt(var + eps)
    o_ref[...] = (y * g_ref[...] + bt_ref[...]).astype(o_ref.dtype)


def dense_residual_layernorm(x, w, b, res, gamma, beta, eps=1e-12):
    """LayerNorm(x @ w + b + res) * gamma + beta, tiled over rows (full N per tile)."""
    M, K = x.shape
    _, N = w.shape
    vmem = _vmem_limit_bytes()
    budget = int(vmem * 0.85)

    def fits(tm):
        need = 2 * 2 * K * N + 2 * 2 * (tm * K + 2 * tm * N) + 6 * 4 * N
        return need <= budget

    tm = next((c for c in (1024, 512, 256, 128, 64, 32, 16, 8)
               if M % c == 0 and fits(c)), M)
    return pl.pallas_call(
        functools.partial(_dense_res_ln_kernel, eps=eps),
        out_shape=jax.ShapeDtypeStruct((M, N), jnp.bfloat16),
        grid=(M // tm,),
        in_specs=[
            pl.BlockSpec((tm, K), lambda i: (i, 0)),
            pl.BlockSpec((K, N), lambda i: (0, 0)),
            pl.BlockSpec((1, N), lambda i: (0, 0)),
            pl.BlockSpec((tm, N), lambda i: (i, 0)),
            pl.BlockSpec((1, N), lambda i: (0, 0)),
            pl.BlockSpec((1, N), lambda i: (0, 0)),
        ],
        out_specs=pl.BlockSpec((tm, N), lambda i: (i, 0)),
        compiler_params=pltpu.CompilerParams(
            dimension_semantics=("parallel",),
            vmem_limit_bytes=vmem),
    )(x, w, b.reshape(1, N), res, gamma.reshape(1, N), beta.reshape(1, N))


# ---------------------------------------------------------------------------
# embedding sum + LayerNorm fused (no f32 [M,H] temporary in HBM)
# ---------------------------------------------------------------------------
def _embed_ln_kernel(we_ref, pe_ref, te_ref, g_ref, b_ref, o_ref, *, eps):
    x = (we_ref[0].astype(jnp.float32)
         + pe_ref[...].astype(jnp.float32)
         + te_ref[...].astype(jnp.float32))
    mean = jnp.mean(x, axis=-1, keepdims=True)
    var = jnp.mean(jnp.square(x - mean), axis=-1, keepdims=True)
    y = (x - mean) * jax.lax.rsqrt(var + eps)
    o_ref[0] = (y * g_ref[...] + b_ref[...]).astype(o_ref.dtype)


def embed_layernorm(we, pe, te, gamma, beta, eps=1e-12):
    """we: [B,S,H] bf16 (gathered word emb), pe: [S,H] bf16, te: [1,H] bf16."""
    B, S, H = we.shape
    return pl.pallas_call(
        functools.partial(_embed_ln_kernel, eps=eps),
        out_shape=jax.ShapeDtypeStruct((B, S, H), jnp.bfloat16),
        grid=(B,),
        in_specs=[
            pl.BlockSpec((1, S, H), lambda b: (b, 0, 0)),
            pl.BlockSpec((S, H), lambda b: (0, 0)),
            pl.BlockSpec((1, H), lambda b: (0, 0)),
            pl.BlockSpec((1, H), lambda b: (0, 0)),
            pl.BlockSpec((1, H), lambda b: (0, 0)),
        ],
        out_specs=pl.BlockSpec((1, S, H), lambda b: (b, 0, 0)),
        compiler_params=pltpu.CompilerParams(
            dimension_semantics=("parallel",),
            vmem_limit_bytes=_vmem_limit_bytes()),
    )(we, pe, te, gamma.reshape(1, H), beta.reshape(1, H))


# ---------------------------------------------------------------------------
# attention: reads fused QKV [B,S,3H] directly, grid = (batch, head_block)
# ---------------------------------------------------------------------------
def _attention_kernel(q_ref, k_ref, v_ref, m_ref, o_ref, *, hpb, dh):
    m = m_ref[0]                                   # (1, S) additive mask (broadcast over rows)
    for i in range(hpb):                           # static unroll over heads packed in this block
        lo, hi = i * dh, (i + 1) * dh
        q = q_ref[0, :, lo:hi]                     # (S, dh) bf16; softmax scale pre-folded into Wq
        k = k_ref[0, :, lo:hi]
        v = v_ref[0, :, lo:hi]
        # TODO(synk): a pre-transposed K layout would avoid the RHS transpose (XLU) here.
        s = jax.lax.dot_general(q, k, (((1,), (1,)), ((), ())),
                                preferred_element_type=jnp.float32)      # q @ k^T : (S, S)
        s = s + m
        s = s - jnp.max(s, axis=-1, keepdims=True)
        p = jnp.exp(s)
        p = p * pl.reciprocal(jnp.sum(p, axis=-1, keepdims=True), approx=True)
        ctx = jnp.dot(p.astype(v.dtype), v, preferred_element_type=jnp.float32)
        o_ref[0, :, lo:hi] = ctx.astype(o_ref.dtype)


def attention(qkv, mask, nh, dh):
    """qkv: [B, S, 3H] bf16 with columns [Q | K | V]; mask: [B, 1, S] additive f32.

    Heads are sliced straight out of the fused QKV activation via column
    BlockSpecs (no JAX-side split / head transposes).  Heads are packed so
    each block's last dim is a multiple of 128 lanes; grid (B, head_blocks)
    keeps live VMEM per-head-block sized and feeds both v7x TensorCores.
    Returns the merged context [B, S, H] bf16 (written via out_spec, no merge
    transpose needed downstream).
    """
    B, S, threeH = qkv.shape
    H = threeH // 3
    hpb = 1 if dh % 128 == 0 else 128 // math.gcd(dh, 128)   # heads per block
    if nh % hpb != 0:
        hpb = nh
    nhb = nh // hpb
    bd = hpb * dh

    return pl.pallas_call(
        functools.partial(_attention_kernel, hpb=hpb, dh=dh),
        out_shape=jax.ShapeDtypeStruct((B, S, H), qkv.dtype),
        grid=(B, nhb),
        in_specs=[
            pl.BlockSpec((1, S, bd), lambda b, j: (b, 0, j)),            # Q head block
            pl.BlockSpec((1, S, bd), lambda b, j: (b, 0, nhb + j)),      # K head block
            pl.BlockSpec((1, S, bd), lambda b, j: (b, 0, 2 * nhb + j)),  # V head block
            pl.BlockSpec((1, 1, S), lambda b, j: (b, 0, 0)),             # additive mask
        ],
        out_specs=pl.BlockSpec((1, S, bd), lambda b, j: (b, 0, j)),
        compiler_params=pltpu.CompilerParams(
            dimension_semantics=("parallel", "parallel"),
            vmem_limit_bytes=_vmem_limit_bytes()),
    )(qkv, qkv, qkv, mask)


# ---------------------------------------------------------------------------
# pooler (tanh dense on [CLS]) + regressor Linear(768 -> 8), fused
# ---------------------------------------------------------------------------
def _pool_reg_kernel(x_ref, pw_ref, pb_ref, rw_ref, rb_ref, o_ref):
    pooled = jnp.tanh(
        jnp.dot(x_ref[...], pw_ref[...], preferred_element_type=jnp.float32)
        + pb_ref[...])
    out = jnp.dot(pooled.astype(rw_ref.dtype), rw_ref[...],
                  preferred_element_type=jnp.float32) + rb_ref[...]
    o_ref[...] = out.astype(o_ref.dtype)


def pooler_regressor(cls_tokens, pw, pb, rw, rb):
    B, H = cls_tokens.shape
    O = rw.shape[1]
    return pl.pallas_call(
        _pool_reg_kernel,
        out_shape=jax.ShapeDtypeStruct((B, O), jnp.float32),
        grid=(1,),
        in_specs=[
            pl.BlockSpec((B, H), lambda i: (0, 0)),
            pl.BlockSpec((H, H), lambda i: (0, 0)),
            pl.BlockSpec((1, H), lambda i: (0, 0)),
            pl.BlockSpec((H, O), lambda i: (0, 0)),
            pl.BlockSpec((1, O), lambda i: (0, 0)),
        ],
        out_specs=pl.BlockSpec((B, O), lambda i: (0, 0)),
    )(cls_tokens, pw, pb.reshape(1, H), rw, rb.reshape(1, O))


# ---------------------------------------------------------------------------
# Parameter init (synthetic, deterministic), scale folding, model assembly
# ---------------------------------------------------------------------------
def init_params(key, cfg):
    H, I = cfg["hidden"], cfg["intermediate"]
    keys = iter(jax.random.split(key, 64 + 16 * cfg["layers"]))

    def nrm(*shape):
        return (jax.random.normal(next(keys), shape, jnp.float32) * 0.02
                ).astype(jnp.bfloat16)

    params = {
        "word_emb": nrm(cfg["vocab"], H),
        "pos_emb": nrm(cfg["max_pos"], H),
        "type_emb": nrm(cfg["type_vocab"], H),
        "emb_ln_g": jnp.ones((H,), jnp.float32),
        "emb_ln_b": jnp.zeros((H,), jnp.float32),
        "pool_w": nrm(H, H),
        "pool_b": jnp.zeros((H,), jnp.float32),
        "reg_w": nrm(H, 8),                        # regressor Linear(768, 8)
        "reg_b": jnp.zeros((8,), jnp.float32),
        "layers": [],
    }
    for _ in range(cfg["layers"]):
        params["layers"].append({
            "qkv_w": nrm(H, 3 * H),                # fused Q|K|V projection
            "qkv_b": jnp.zeros((3 * H,), jnp.float32),
            "ao_w": nrm(H, H), "ao_b": jnp.zeros((H,), jnp.float32),
            "attn_ln_g": jnp.ones((H,), jnp.float32),
            "attn_ln_b": jnp.zeros((H,), jnp.float32),
            "i_w": nrm(H, I), "i_b": jnp.zeros((I,), jnp.float32),
            "o_w": nrm(I, H), "o_b": jnp.zeros((H,), jnp.float32),
            "ffn_ln_g": jnp.ones((H,), jnp.float32),
            "ffn_ln_b": jnp.zeros((H,), jnp.float32),
        })
    return params


def fold_softmax_scale(params, cfg):
    """Parameter-prep: fold 1/sqrt(dh) into the Q slice of the fused QKV weights/bias
    so the attention kernel never scales the (S, S) score block."""
    H = cfg["hidden"]
    scale = 1.0 / float(H // cfg["heads"]) ** 0.5
    out = dict(params)
    out["layers"] = []
    for lp in params["layers"]:
        lp = dict(lp)
        lp["qkv_w"] = lp["qkv_w"].at[:, :H].multiply(scale)
        lp["qkv_b"] = lp["qkv_b"].at[:H].multiply(scale)
        out["layers"].append(lp)
    return out


def camembert_regressor_forward(params, input_ids, attention_mask, cfg):
    """params must have the softmax scale folded (see fold_softmax_scale)."""
    B, S = input_ids.shape
    H = cfg["hidden"]
    nh = cfg["heads"]
    dh = H // nh
    M = B * S

    # --- embeddings: gathers are glue JAX; sum + LayerNorm fused in Pallas ---
    we = params["word_emb"][input_ids]                       # [B, S, H] bf16
    pe = params["pos_emb"][:S]                               # [S, H] bf16
    te = params["type_emb"][0:1]                             # [1, H] bf16 (token_type_ids = 0)
    h = embed_layernorm(we, pe, te, params["emb_ln_g"], params["emb_ln_b"])
    h = h.reshape(M, H)                                      # bf16

    # additive attention mask [B, 1, S], indexed per batch element in the kernel
    ext = ((1.0 - attention_mask.astype(jnp.float32)) * -10000.0)[:, None, :]

    # --- encoder layers ---
    for lp in params["layers"]:
        qkv = dense(h, lp["qkv_w"], lp["qkv_b"])             # [M, 3H] (Q pre-scaled)
        ctx = attention(qkv.reshape(B, S, 3 * H), ext, nh, dh)   # [B, S, H]
        h = dense_residual_layernorm(ctx.reshape(M, H), lp["ao_w"], lp["ao_b"], h,
                                     lp["attn_ln_g"], lp["attn_ln_b"])
        ffn = dense(h, lp["i_w"], lp["i_b"], activation="gelu")  # [M, I]
        h = dense_residual_layernorm(ffn, lp["o_w"], lp["o_b"], h,
                                     lp["ffn_ln_g"], lp["ffn_ln_b"])

    # --- pooler (= outputs[1] of BertModel) + regressor (dropout = identity) ---
    cls = h.reshape(B, S, H)[:, 0, :]                        # [B, H]
    return pooler_regressor(cls, params["pool_w"], params["pool_b"],
                            params["reg_w"], params["reg_b"])  # [B, 8] f32


# ---------------------------------------------------------------------------
if __name__ == "__main__":
    # NOTE: at these tiny test shapes (M=B*S=16, S=8) the kernels are pure per-step
    # overhead; tiling/streaming choices only pay off at realistic B*S / S.
    cfg = dict(vocab=128, hidden=768, heads=12, layers=2,
               intermediate=3072, max_pos=32, type_vocab=2)

    key = jax.random.PRNGKey(0)
    pkey, ikey = jax.random.split(key)
    params = fold_softmax_scale(init_params(pkey, cfg), cfg)

    B, S = 2, 8
    input_ids = jax.random.randint(ikey, (B, S), 0, cfg["vocab"], dtype=jnp.int32)
    attention_mask = jnp.ones((B, S), dtype=jnp.int32)

    out = camembert_regressor_forward(params, input_ids, attention_mask, cfg)
    out = jax.block_until_ready(out)
    assert out.shape == (B, 8) and out.dtype == jnp.float32
    print("KERNEL_OK")
</pallas_src>

<mosaic_0001>
module attributes {stable_mosaic.version = 11 : i64} {
  func.func @_embed_ln_kernel(%arg0: i32, %arg1: memref<1x8x768xbf16, #tpu.memory_space<vmem>>, %arg2: memref<8x768xbf16, #tpu.memory_space<vmem>>, %arg3: memref<1x768xbf16, #tpu.memory_space<vmem>>, %arg4: memref<1x768xf32, #tpu.memory_space<vmem>>, %arg5: memref<1x768xf32, #tpu.memory_space<vmem>>, %arg6: memref<1x8x768xbf16, #tpu.memory_space<vmem>>) attributes {dimension_semantics = [#tpu.dimension_semantics<parallel>], iteration_bounds = array<i64: 2>, scalar_prefetch = 0 : i64, scratch_operands = 0 : i64, tpu.core_type = #tpu.core_type<tc>, window_params = [{transform_indices = @transform_0, window_bounds = array<i64: 1, 8, 768>}, {pipeline_mode = #tpu.pipeline_mode<synchronous>, transform_indices = @transform_1, window_bounds = array<i64: 8, 768>}, {pipeline_mode = #tpu.pipeline_mode<synchronous>, transform_indices = @transform_2, window_bounds = array<i64: 1, 768>}, {pipeline_mode = #tpu.pipeline_mode<synchronous>, transform_indices = @transform_3, window_bounds = array<i64: 1, 768>}, {pipeline_mode = #tpu.pipeline_mode<synchronous>, transform_indices = @transform_4, window_bounds = array<i64: 1, 768>}, {transform_indices = @transform_5, window_bounds = array<i64: 1, 8, 768>}]} {
    %c0 = arith.constant 0 : index
    %c0_0 = arith.constant 0 : index
    %c0_1 = arith.constant 0 : index
    %0 = vector.load %arg1[%c0, %c0_0, %c0_1] : memref<1x8x768xbf16, #tpu.memory_space<vmem>>, vector<1x8x768xbf16>
    %1 = vector.shape_cast %0 : vector<1x8x768xbf16> to vector<8x768xbf16>
    %2 = arith.extf %1 : vector<8x768xbf16> to vector<8x768xf32>
    %c0_2 = arith.constant 0 : index
    %c0_3 = arith.constant 0 : index
    %3 = vector.load %arg2[%c0_2, %c0_3] : memref<8x768xbf16, #tpu.memory_space<vmem>>, vector<8x768xbf16>
    %4 = arith.extf %3 : vector<8x768xbf16> to vector<8x768xf32>
    %5 = arith.addf %2, %4 : vector<8x768xf32>
    %c0_4 = arith.constant 0 : index
    %c0_5 = arith.constant 0 : index
    %6 = vector.load %arg3[%c0_4, %c0_5] : memref<1x768xbf16, #tpu.memory_space<vmem>>, vector<1x768xbf16>
    %7 = arith.extf %6 : vector<1x768xbf16> to vector<1x768xf32>
    %8 = vector.broadcast %7 : vector<1x768xf32> to vector<8x768xf32>
    %9 = arith.addf %5, %8 : vector<8x768xf32>
    %cst = arith.constant dense<0.000000e+00> : vector<8xf32>
    %10 = vector.multi_reduction <add>, %9, %cst [1] : vector<8x768xf32> to vector<8xf32>
    %11 = vector.shape_cast %10 : vector<8xf32> to vector<8x1xf32>
    %cst_6 = arith.constant 7.680000e+02 : f32
    %12 = vector.broadcast %cst_6 : f32 to vector<8x1xf32>
    %13 = arith.divf %11, %12 : vector<8x1xf32>
    %14 = vector.broadcast %13 : vector<8x1xf32> to vector<8x768xf32>
    %15 = arith.subf %9, %14 : vector<8x768xf32>
    %16 = arith.mulf %15, %15 : vector<8x768xf32>
    %cst_7 = arith.constant dense<0.000000e+00> : vector<8xf32>
    %17 = vector.multi_reduction <add>, %16, %cst_7 [1] : vector<8x768xf32> to vector<8xf32>
    %18 = vector.shape_cast %17 : vector<8xf32> to vector<8x1xf32>
    %cst_8 = arith.constant 7.680000e+02 : f32
    %19 = vector.broadcast %cst_8 : f32 to vector<8x1xf32>
    %20 = arith.divf %18, %19 : vector<8x1xf32>
    %21 = vector.broadcast %13 : vector<8x1xf32> to vector<8x768xf32>
    %22 = arith.subf %9, %21 : vector<8x768xf32>
    %cst_9 = arith.constant 9.99999996E-13 : f32
    %23 = vector.broadcast %cst_9 : f32 to vector<8x1xf32>
    %24 = arith.addf %20, %23 : vector<8x1xf32>
    %25 = math.rsqrt %24 : vector<8x1xf32>
    %26 = vector.broadcast %25 : vector<8x1xf32> to vector<8x768xf32>
    %27 = arith.mulf %22, %26 : vector<8x768xf32>
    %c0_10 = arith.constant 0 : index
    %c0_11 = arith.constant 0 : index
    %28 = vector.load %arg4[%c0_10, %c0_11] : memref<1x768xf32, #tpu.memory_space<vmem>>, vector<1x768xf32>
    %29 = vector.broadcast %28 : vector<1x768xf32> to vector<8x768xf32>
    %30 = arith.mulf %27, %29 : vector<8x768xf32>
    %c0_12 = arith.constant 0 : index
    %c0_13 = arith.constant 0 : index
    %31 = vector.load %arg5[%c0_12, %c0_13] : memref<1x768xf32, #tpu.memory_space<vmem>>, vector<1x768xf32>
    %32 = vector.broadcast %31 : vector<1x768xf32> to vector<8x768xf32>
    %33 = arith.addf %30, %32 : vector<8x768xf32>
    %34 = arith.truncf %33 : vector<8x768xf32> to vector<8x768xbf16>
    %c0_14 = arith.constant 0 : index
    %c0_15 = arith.constant 0 : index
    %c0_16 = arith.constant 0 : index
    %35 = vector.load %arg6[%c0_14, %c0_15, %c0_16] : memref<1x8x768xbf16, #tpu.memory_space<vmem>>, vector<1x8x768xbf16>
    %36 = vector.shape_cast %35 : vector<1x8x768xbf16> to vector<8x768xbf16>
    %37 = vector.shape_cast %34 : vector<8x768xbf16> to vector<1x8x768xbf16>
    tpu.vector_store %arg6[%c0_14, %c0_15, %c0_16], %37 {strides = array<i32>} : memref<1x8x768xbf16, #tpu.memory_space<vmem>>, vector<1x8x768xbf16>,
    return
  }
  func.func @transform_0(%arg0: i32) -> (i32, i32, i32) {
    %c0_i32 = arith.constant 0 : i32
    %c0_i32_0 = arith.constant 0 : i32
    %c0_i32_1 = arith.constant 0 : i32
    return %arg0, %c0_i32, %c0_i32_0 : i32, i32, i32
  }
  func.func @transform_1(%arg0: i32) -> (i32, i32) {
    %c0_i32 = arith.constant 0 : i32
    %c0_i32_0 = arith.constant 0 : i32
    %c0_i32_1 = arith.constant 0 : i32
    return %c0_i32, %c0_i32_0 : i32, i32
  }
  func.func @transform_2(%arg0: i32) -> (i32, i32) {
    %c0_i32 = arith.constant 0 : i32
    %c0_i32_0 = arith.constant 0 : i32
    %c0_i32_1 = arith.constant 0 : i32
    return %c0_i32, %c0_i32_0 : i32, i32
  }
  func.func @transform_3(%arg0: i32) -> (i32, i32) {
    %c0_i32 = arith.constant 0 : i32
    %c0_i32_0 = arith.constant 0 : i32
    %c0_i32_1 = arith.constant 0 : i32
    return %c0_i32, %c0_i32_0 : i32, i32
  }
  func.func @transform_4(%arg0: i32) -> (i32, i32) {
    %c0_i32 = arith.constant 0 : i32
    %c0_i32_0 = arith.constant 0 : i32
    %c0_i32_1 = arith.constant 0 : i32
    return %c0_i32, %c0_i32_0 : i32, i32
  }
  func.func @transform_5(%arg0: i32) -> (i32, i32, i32) {
    %c0_i32 = arith.constant 0 : i32
    %c0_i32_0 = arith.constant 0 : i32
    %c0_i32_1 = arith.constant 0 : i32
    return %arg0, %c0_i32, %c0_i32_0 : i32, i32, i32
  }
}

</mosaic_0001>

<llo_original>
// kernel: tpu_custom_call.1
$region0: #{tpu_custom_call.1}
  #allocation0 [shape = 'u32[]', space=smem, size = 0x4, offset = 0x4, fixed_abs, tag = 'smem constant byte address 0x4 - core index']
  #allocation1 [shape = 'u32[144,128]{1,0:T(1,128)}', space=vmem, size = 0x12000, scoped, tag = 'internal scratch']
  %s0 = inlined_call_operand.hbm [shape: bf16[2,8,768], index: 0, kind: input, shape index: {}]
  %s1 = inlined_call_operand.hbm [shape: bf16[8,768], index: 1, kind: input, shape index: {}]
  %s2 = inlined_call_operand.vmem [shape: bf16[1,768], index: 2, kind: input, shape index: {}]
  %s3 = inlined_call_operand.hbm [shape: f32[1,768], index: 3, kind: input, shape index: {}]
  %s4 = inlined_call_operand.vmem [shape: f32[1,768], index: 4, kind: input, shape index: {}]
  %s5 = inlined_call_operand.hbm [shape: bf16[2,8,768], index: 5, kind: output, shape index: {}]
  %s6 = sld [smem:[#allocation0]]
  $region65: #{tpu_custom_call.1} parent=0
    _
  %s8 = ssub.s32 1, %s6
  %s9 = scalar_select 0, %s8, %s6
  $region1: #{tpu_custom_call.1} parent=0
    #allocation2 [shape = 'u8[24576]{0}', space=vmem, size = 0x6000, scoped, tag = 'input window, operand 0']
    #allocation3 [shape = 's32[2]{0}', space=sflag, size = 0x8, scoped, tag = 'scoped memory for tpu_custom_call.1']
    #allocation4 [shape = 's32[2]{0}', space=sflag, size = 0x8, scoped, tag = 'scoped memory for tpu_custom_call.1']
    #allocation5 [shape = 'u8[12288]{0}', space=vmem, size = 0x3000, scoped, tag = 'input window, operand 1, single buffered']
    #allocation6 [shape = 's32[1]{0}', space=sflag, size = 0x4, scoped, tag = 'scoped memory for tpu_custom_call.1']
    #allocation7 [shape = 'u8[3072]{0}', space=vmem, size = 0xc00, scoped, tag = 'input window, operand 3, single buffered']
    #allocation8 [shape = 'u8[24576]{0}', space=vmem, size = 0x6000, scoped, tag = 'output window, operand 0']
    %10 = vsyncpa [#allocation3], 0
    %s11 = scalar_lea.sflag [#allocation3], 1
    %12 = vsyncpa %s11, 0
    %13 = vsyncpa [#allocation6], 0
    %14 = vsyncpa [#allocation4], 0
    %s15 = scalar_lea.sflag [#allocation4], 1
    %16 = vsyncpa %s15, 0
    loop: start=0, step=1, limit=4
    $region2: #{tpu_custom_call.1} parent=1 // loop_pre_header
      _
    $region3: #{tpu_custom_call.1} parent=1 // loop_header
      %s18 = sphi 0, %s22
      %p19 = scmp.ge.s32.totalorder %s18, 4
      %s28 = sphi 0, %s30
      %s31 = sphi 0, %s28
      %s32 = sphi 0, %s31
      %s48 = sphi 0, %s32
      %s52 = sphi 0, %s52
      %s54 = sphi 0, %s52
      %s55 = sphi 0, %s54
      %s69 = sphi 0, %s55
      %s73 = sphi 0, %s73
      %s75 = sphi 0, %s73
      %s76 = sphi 0, %s75
      %s90 = sphi 0, %s76
      %s94 = sphi 0, %s94
      %s96 = sphi 0, %s94
      %s97 = sphi 0, %s96
      %s111 = sphi 0, %s97
      %s115 = sphi 0, %s115
      %s117 = sphi 0, %s115
      %s118 = sphi 0, %s117
      %s132 = sphi 0, %s118
      %s138 = sphi 0, %s140
      %s141 = sphi 0, %s138
      %s142 = sphi 0, %s141
      %s158 = sphi 0, %s142
    $region4: #{tpu_custom_call.1} parent=1 // loop_header_branch
      %21 = sbr.rel (%p19) target = $region8
    $region5: #{tpu_custom_call.1} parent=1 // loop_body
      %s23 = ssub.s32 %s18, 1
      %s24 = ssub.s32 %s18, 2
      %s25 = sadd.s32 %s18, 1
      %s26 = ssub.s32 %s18, %s25
      %p27 = scmp.eq.s32.totalorder %s26, 0
      %s29 = sadd.s32 %s28, 1
      %s30 = scalar_select %p27, %s28, %s29
      %p33 = pneg %p27
      %p34 = scmp.eq.s32.totalorder %s18, 1
      %p35 = por %p33, %p34
      %p36 = scmp.ne.s32.totalorder %s28, %s31
      %p37 = scmp.eq.s32.totalorder %s18, 0
      %p38 = por %p36, %p37
      %p39 = scmp.ne.s32.totalorder %s28, %s31
      %p40 = scmp.eq.s32.totalorder %s23, 1
      %p41 = por %p39, %p40
      %p42 = scmp.ne.s32.totalorder %s31, %s32
      %p43 = scmp.eq.s32.totalorder %s23, 0
      %p44 = por %p42, %p43
      %p45 = scmp.ne.s32.totalorder %s31, %s32
      %p46 = scmp.eq.s32.totalorder %s24, 1
      %p47 = por %p45, %p46
      %p49 = scmp.ne.s32.totalorder %s32, %s48
      %p50 = scmp.eq.s32.totalorder %s24, 0
      %p51 = por %p49, %p50
      %s53 = sadd.s32 %s52, 1
      %p56 = scmp.eq.s32.totalorder %s18, 1
      %p57 = scmp.ne.s32.totalorder %s52, %s54
      %p58 = scmp.eq.s32.totalorder %s18, 0
      %p59 = por %p57, %p58
      %p60 = scmp.ne.s32.totalorder %s52, %s54
      %p61 = scmp.eq.s32.totalorder %s23, 1
      %p62 = por %p60, %p61
      %p63 = scmp.ne.s32.totalorder %s54, %s55
      %p64 = scmp.eq.s32.totalorder %s23, 0
      %p65 = por %p63, %p64
      %p66 = scmp.ne.s32.totalorder %s54, %s55
      %p67 = scmp.eq.s32.totalorder %s24, 1
      %p68 = por %p66, %p67
      %p70 = scmp.ne.s32.totalorder %s55, %s69
      %p71 = scmp.eq.s32.totalorder %s24, 0
      %p72 = por %p70, %p71
      %s74 = sadd.s32 %s73, 1
      %p77 = scmp.eq.s32.totalorder %s18, 1
      %p78 = scmp.ne.s32.totalorder %s73, %s75
      %p79 = scmp.eq.s32.totalorder %s18, 0
      %p80 = por %p78, %p79
      %p81 = scmp.ne.s32.totalorder %s73, %s75
      %p82 = scmp.eq.s32.totalorder %s23, 1
      %p83 = por %p81, %p82
      %p84 = scmp.ne.s32.totalorder %s75, %s76
      %p85 = scmp.eq.s32.totalorder %s23, 0
      %p86 = por %p84, %p85
      %p87 = scmp.ne.s32.totalorder %s75, %s76
      %p88 = scmp.eq.s32.totalorder %s24, 1
      %p89 = por %p87, %p88
      %p91 = scmp.ne.s32.totalorder %s76, %s90
      %p92 = scmp.eq.s32.totalorder %s24, 0
      %p93 = por %p91, %p92
      %s95 = sadd.s32 %s94, 1
      %p98 = scmp.eq.s32.totalorder %s18, 1
      %p99 = scmp.ne.s32.totalorder %s94, %s96
      %p100 = scmp.eq.s32.totalorder %s18, 0
      %p101 = por %p99, %p100
      %p102 = scmp.ne.s32.totalorder %s94, %s96
      %p103 = scmp.eq.s32.totalorder %s23, 1
      %p104 = por %p102, %p103
      %p105 = scmp.ne.s32.totalorder %s96, %s97
      %p106 = scmp.eq.s32.totalorder %s23, 0
      %p107 = por %p105, %p106
      %p108 = scmp.ne.s32.totalorder %s96, %s97
      %p109 = scmp.eq.s32.totalorder %s24, 1
      %p110 = por %p108, %p109
      %p112 = scmp.ne.s32.totalorder %s97, %s111
      %p113 = scmp.eq.s32.totalorder %s24, 0
      %p114 = por %p112, %p113
      %s116 = sadd.s32 %s115, 1
      %p119 = scmp.eq.s32.totalorder %s18, 1
      %p120 = scmp.ne.s32.totalorder %s115, %s117
      %p121 = scmp.eq.s32.totalorder %s18, 0
      %p122 = por %p120, %p121
      %p123 = scmp.ne.s32.totalorder %s115, %s117
      %p124 = scmp.eq.s32.totalorder %s23, 1
      %p125 = por %p123, %p124
      %p126 = scmp.ne.s32.totalorder %s117, %s118
      %p127 = scmp.eq.s32.totalorder %s23, 0
      %p128 = por %p126, %p127
      %p129 = scmp.ne.s32.totalorder %s117, %s118
      %p130 = scmp.eq.s32.totalorder %s24, 1
      %p131 = por %p129, %p130
      %p133 = scmp.ne.s32.totalorder %s118, %s132
      %p134 = scmp.eq.s32.totalorder %s24, 0
      %p135 = por %p133, %p134
      %s136 = ssub.s32 %s18, %s25
      %p137 = scmp.eq.s32.totalorder %s136, 0
      %s139 = sadd.s32 %s138, 1
      %s140 = scalar_select %p137, %s138, %s139
      %p143 = pneg %p137
      %p144 = scmp.eq.s32.totalorder %s18, 1
      %p145 = por %p143, %p144
      %p146 = scmp.ne.s32.totalorder %s138, %s141
      %p147 = scmp.eq.s32.totalorder %s18, 0
      %p148 = por %p146, %p147
      %p149 = scmp.ne.s32.totalorder %s138, %s141
      %p150 = scmp.eq.s32.totalorder %s23, 1
      %p151 = por %p149, %p150
      %p152 = scmp.ne.s32.totalorder %s141, %s142
      %p153 = scmp.eq.s32.totalorder %s23, 0
      %p154 = por %p152, %p153
      %p155 = scmp.ne.s32.totalorder %s141, %s142
      %p156 = scmp.eq.s32.totalorder %s24, 1
      %p157 = por %p155, %p156
      %p159 = scmp.ne.s32.totalorder %s142, %s158
      %p160 = scmp.eq.s32.totalorder %s24, 0
      %p161 = por %p159, %p160
      %p162 = scmp.le.s32.totalorder 1, %s18
      %p163 = scmp.lt.s32.totalorder %s18, 3
      %p164 = pnand %p162, %p163
      %p165 = pneg %p164
      // Predicated region
      $region9: #{tpu_custom_call.1} parent=5 // pred_check
        _
      $region10: #{tpu_custom_call.1} parent=5 // pred_check_branch
        %167 = sbr.rel (%p164) target = $region12
      $region11: #{tpu_custom_call.1} parent=5 // pred_region
        %s168 = ssub.s32 %s18, 1
        // Predicated region
        $region13: #{tpu_custom_call.1} parent=11 // pred_check
          %p169 = pneg %p65
        $region14: #{tpu_custom_call.1} parent=11 // pred_check_branch
          %171 = sbr.rel (%p169) target = $region16
        $region15: #{tpu_custom_call.1} parent=11 // pred_region
          %s173 = ssub.s32 384, 384
          %174 = vsyncadd [#allocation6], %s173
          %s176 = sshll.u32 [#allocation5], 4
          %s177 = int_to_ptr.vmem [resolvable:$true] %s176
          %179 = dma.hbm_to_vmem [thread:$0]  %s1, 384, %s177, [#allocation6]
        $region16: #{tpu_custom_call.1} parent=11 // pred_fallthru
          _
        // Predicated region
        $region17: #{tpu_custom_call.1} parent=11 // pred_check
          %p180 = pneg %p86
        $region18: #{tpu_custom_call.1} parent=11 // pred_check_branch
          %182 = sbr.rel (%p180) target = $region20
        $region19: #{tpu_custom_call.1} parent=11 // pred_region
          _
        $region20: #{tpu_custom_call.1} parent=11 // pred_fallthru
          _
        // Predicated region
        $region21: #{tpu_custom_call.1} parent=11 // pred_check
          %p183 = pneg %p107
        $region22: #{tpu_custom_call.1} parent=11 // pred_check_branch
          %185 = sbr.rel (%p183) target = $region24
        $region23: #{tpu_custom_call.1} parent=11 // pred_region
          %s187 = ssub.s32 96, 96
          %188 = vsyncadd [#allocation6], %s187
          %s190 = sshll.u32 [#allocation7], 4
          %s191 = int_to_ptr.vmem [resolvable:$true] %s190
          %193 = dma.hbm_to_vmem [thread:$0]  %s3, 96, %s191, [#allocation6]
        $region24: #{tpu_custom_call.1} parent=11 // pred_fallthru
          _
        // Predicated region
        $region25: #{tpu_custom_call.1} parent=11 // pred_check
          %p194 = pneg %p128
        $region26: #{tpu_custom_call.1} parent=11 // pred_check_branch
          %196 = sbr.rel (%p194) target = $region28
        $region27: #{tpu_custom_call.1} parent=11 // pred_region
          _
        $region28: #{tpu_custom_call.1} parent=11 // pred_fallthru
          _
      $region12: #{tpu_custom_call.1} parent=5 // pred_fallthru
        _
      %p197 = scmp.lt.s32.totalorder %s18, 2
      // Predicated region
      $region29: #{tpu_custom_call.1} parent=5 // pred_check
        %p198 = pneg %p197
      $region30: #{tpu_custom_call.1} parent=5 // pred_check_branch
        %200 = sbr.rel (%p198) target = $region32
      $region31: #{tpu_custom_call.1} parent=5 // pred_region
        // Predicated region
        $region33: #{tpu_custom_call.1} parent=31 // pred_check
          %p201 = pneg %p38
        $region34: #{tpu_custom_call.1} parent=31 // pred_check_branch
          %203 = sbr.rel (%p201) target = $region36
        $region35: #{tpu_custom_call.1} parent=31 // pred_region
          %s204 = sand.u32 %s28, 1
          %s205 = scalar_lea.sflag [#allocation3], %s204
          %s206 = sand.u32 %s28, 1
          %s207 = smul.addr %s206, 24
          %s208 = scalar_lea.vmem [#allocation2], %s207
          %s210 = ssub.s32 384, 384
          %211 = vsyncadd %s205, %s210
          %s212 = smul.addr %s18, 6
          %s213 = smul.addr %s212, 64
          %s214 = scalar_lea.hbm %s0, %s213
          %s216 = sshll.u32 %s208, 4
          %s217 = int_to_ptr.vmem [resolvable:$true] %s216
          %219 = dma.hbm_to_vmem [thread:$0]  %s214, 384, %s217, %s205
        $region36: #{tpu_custom_call.1} parent=31 // pred_fallthru
          _
      $region32: #{tpu_custom_call.1} parent=5 // pred_fallthru
        _
      %p220 = scmp.le.s32.totalorder 1, %s18
      %p221 = scmp.lt.s32.totalorder %s18, 3
      %p222 = pnand %p220, %p221
      %p223 = pneg %p222
      // Predicated region
      $region37: #{tpu_custom_call.1} parent=5 // pred_check
        _
      $region38: #{tpu_custom_call.1} parent=5 // pred_check_branch
        %225 = sbr.rel (%p222) target = $region40
      $region39: #{tpu_custom_call.1} parent=5 // pred_region
        %s226 = ssub.s32 %s18, 1
        %s227 = sand.u32 %s31, 1
        %s228 = scalar_lea.sflag [#allocation3], %s227
        %s229 = sand.u32 %s31, 1
        %s230 = smul.addr %s229, 24
        %s231 = scalar_lea.vmem [#allocation2], %s230
        // Predicated region
        $region41: #{tpu_custom_call.1} parent=39 // pred_check
          %p232 = pneg %p44
        $region42: #{tpu_custom_call.1} parent=39 // pred_check_branch
          %234 = sbr.rel (%p232) target = $region44
        $region43: #{tpu_custom_call.1} parent=39 // pred_region
          %235 = dma.done %s228, 384
        $region44: #{tpu_custom_call.1} parent=39 // pred_fallthru
          _
        // Predicated region
        $region45: #{tpu_custom_call.1} parent=39 // pred_check
          %p236 = pneg %p65
        $region46: #{tpu_custom_call.1} parent=39 // pred_check_branch
          %238 = sbr.rel (%p236) target = $region48
        $region47: #{tpu_custom_call.1} parent=39 // pred_region
          %239 = dma.done [#allocation6], 384
        $region48: #{tpu_custom_call.1} parent=39 // pred_fallthru
          _
        // Predicated region
        $region49: #{tpu_custom_call.1} parent=39 // pred_check
          %p240 = pneg %p107
        $region50: #{tpu_custom_call.1} parent=39 // pred_check_branch
          %242 = sbr.rel (%p240) target = $region52
        $region51: #{tpu_custom_call.1} parent=39 // pred_region
          %243 = dma.done [#allocation6], 96
        $region52: #{tpu_custom_call.1} parent=39 // pred_fallthru
          _
        %s244 = sand.u32 %s31, 1
        %s245 = scalar_lea.sflag [#allocation3], %s244
        %s246 = sand.u32 %s31, 1
        %s247 = smul.addr %s246, 24
        %s248 = scalar_lea.vmem [#allocation2], %s247
        %p249 = pneg %p44
        %p250 = pneg %p41
        %p251 = pneg %p65
        %p252 = pneg %p62
        %p253 = pneg %p86
        %p254 = pneg %p83
        %p255 = pneg %p107
        %p256 = pneg %p104
        %p257 = pneg %p128
        %p258 = pneg %p125
        %p259 = pneg %p154
        %p260 = pneg %p151
        %s261 = sand.u32 %s141, 1
        %s262 = scalar_lea.sflag [#allocation4], %s261
        %s263 = sand.u32 %s141, 1
        %s264 = smul.addr %s263, 24
        %s265 = scalar_lea.vmem [#allocation8], %s264
        %v266 = vld [vmem:[%s231] sm:$0xff]
        %v267 = vld [vmem:[%s231 + $0x8] sm:$0xff]
        %v268 = vld [vmem:[%s231 + $0x10] sm:$0xff]
        %v269 = vunpack.c.l.bf16 %v266
        %v270 = vunpack.c.h.bf16 %v266
        %v271 = vunpack.c.l.bf16 %v267
        %v272 = vunpack.c.h.bf16 %v267
        %v273 = vunpack.c.l.bf16 %v268
        %v274 = vunpack.c.h.bf16 %v268
        %v275 = vld [vmem:[#allocation5] sm:$0xff]
        %v276 = vld [vmem:[#allocation5 + $0x8] sm:$0xff]
        %v277 = vld [vmem:[#allocation5 + $0x10] sm:$0xff]
        %v278 = vunpack.c.l.bf16 %v275
        %v279 = vunpack.c.h.bf16 %v275
        %v280 = vunpack.c.l.bf16 %v276
        %v281 = vunpack.c.h.bf16 %v276
        %v282 = vunpack.c.l.bf16 %v277
        %v283 = vunpack.c.h.bf16 %v277
        %v284 = vadd.f32 %v269, %v278
        %v285 = vadd.f32 %v270, %v279
        %v286 = vadd.f32 %v271, %v280
        %v287 = vadd.f32 %v272, %v281
        %v288 = vadd.f32 %v273, %v282
        %v289 = vadd.f32 %v274, %v283
        %v290 = vld [vmem:[%s2] sm:$0x3f]
        %v291 = vunpack.c.l.bf16 %v290
        %v292 = vunpack.c.h.bf16 %v290
        %v295 = vlaneseq
        %v296 = vshrl.u32 %v295, 7
        %v297 = vsub.s32 0, %v296
        %v298 = vrot.slane %v291, %v297
        %v299 = vlaneseq
        %v300 = vshrl.u32 %v299, 7
        %v301 = vsub.s32 2, %v300
        %v302 = vrot.slane %v291, %v301
        %v303 = vlaneseq
        %v304 = vshrl.u32 %v303, 7
        %v305 = vsub.s32 4, %v304
        %v306 = vrot.slane %v291, %v305
        %v307 = vlaneseq
        %v308 = vshrl.u32 %v307, 7
        %v309 = vsub.s32 6, %v308
        %v310 = vrot.slane %v291, %v309
        %v311 = vlaneseq
        %v312 = vshrl.u32 %v311, 7
        %v313 = vsub.s32 0, %v312
        %v314 = vrot.slane %v292, %v313
        %v315 = vlaneseq
        %v316 = vshrl.u32 %v315, 7
        %v317 = vsub.s32 2, %v316
        %v318 = vrot.slane %v292, %v317
        %v325 = vlaneseq
        %v326 = vshrl.u32 %v325, 7
        %v327 = vsub.s32 0, %v326
        %v328 = vrot.slane %v298, %v327
        %v329 = vlaneseq
        %v330 = vshrl.u32 %v329, 7
        %v331 = vsub.s32 0, %v330
        %v332 = vrot.slane %v302, %v331
        %v333 = vlaneseq
        %v334 = vshrl.u32 %v333, 7
        %v335 = vsub.s32 0, %v334
        %v336 = vrot.slane %v306, %v335
        %v337 = vlaneseq
        %v338 = vshrl.u32 %v337, 7
        %v339 = vsub.s32 0, %v338
        %v340 = vrot.slane %v310, %v339
        %v341 = vlaneseq
        %v342 = vshrl.u32 %v341, 7
        %v343 = vsub.s32 0, %v342
        %v344 = vrot.slane %v314, %v343
        %v345 = vlaneseq
        %v346 = vshrl.u32 %v345, 7
        %v347 = vsub.s32 0, %v346
        %v348 = vrot.slane %v318, %v347
        %v349 = vadd.f32 %v284, %v328
        %v350 = vadd.f32 %v285, %v332
        %v351 = vadd.f32 %v286, %v336
        %v352 = vadd.f32 %v287, %v340
        %v353 = vadd.f32 %v288, %v344
        %v354 = vadd.f32 %v289, %v348
        %v355 = vadd.f32 %v349, %v350
        %v356 = vadd.f32 %v355, %v351
        %v357 = vadd.f32 %v356, %v352
        %v358 = vadd.f32 %v357, %v353
        %v359 = vadd.f32 %v358, %v354
        %360 = vadd.xlane.f32.xlu0 %v359
        %v361 = vpop.xlane.xlu0 %360
        %v362 = vrcp.pop 768.0
        %v363 = vmul.f32 %v361, %v362
        %v364 = vsub.f32 %v349, %v363
        %v365 = vsub.f32 %v350, %v363
        %v366 = vsub.f32 %v351, %v363
        %v367 = vsub.f32 %v352, %v363
        %v368 = vsub.f32 %v353, %v363
        %v369 = vsub.f32 %v354, %v363
        %v370 = vmul.f32 %v364, %v364
        %v371 = vmul.f32 %v365, %v365
        %v372 = vmul.f32 %v366, %v366
        %v373 = vmul.f32 %v367, %v367
        %v374 = vmul.f32 %v368, %v368
        %v375 = vmul.f32 %v369, %v369
        %v376 = vadd.f32 %v370, %v371
        %v377 = vadd.f32 %v376, %v372
        %v378 = vadd.f32 %v377, %v373
        %v379 = vadd.f32 %v378, %v374
        %v380 = vadd.f32 %v379, %v375
        %381 = vadd.xlane.f32.xlu0 %v380
        %v382 = vpop.xlane.xlu0 %381
        %v383 = vmul.f32 %v382, %v362
        %v384 = vadd.f32 %v383, 1e-12
        %v385 = vrsqrt.pop %v384
        %v386 = vmul.f32 %v364, %v385
        %v387 = vmul.f32 %v365, %v385
        %v388 = vmul.f32 %v366, %v385
        %v389 = vmul.f32 %v367, %v385
        %v390 = vmul.f32 %v368, %v385
        %v391 = vmul.f32 %v369, %v385
        %v392 = vld [vmem:[#allocation7] sm:$0x3f]
        %v394 = vlaneseq
        %v395 = vshrl.u32 %v394, 7
        %v396 = vsub.s32 0, %v395
        %v397 = vrot.slane %v392, %v396
        %v398 = vlaneseq
        %v399 = vshrl.u32 %v398, 7
        %v400 = vsub.s32 1, %v399
        %v401 = vrot.slane %v392, %v400
        %v402 = vlaneseq
        %v403 = vshrl.u32 %v402, 7
        %v404 = vsub.s32 2, %v403
        %v405 = vrot.slane %v392, %v404
        %v406 = vlaneseq
        %v407 = vshrl.u32 %v406, 7
        %v408 = vsub.s32 3, %v407
        %v409 = vrot.slane %v392, %v408
        %v410 = vlaneseq
        %v411 = vshrl.u32 %v410, 7
        %v412 = vsub.s32 4, %v411
        %v413 = vrot.slane %v392, %v412
        %v414 = vlaneseq
        %v415 = vshrl.u32 %v414, 7
        %v416 = vsub.s32 5, %v415
        %v417 = vrot.slane %v392, %v416
        %v424 = vmul.f32 %v386, %v397
        %v425 = vmul.f32 %v387, %v401
        %v426 = vmul.f32 %v388, %v405
        %v427 = vmul.f32 %v389, %v409
        %v428 = vmul.f32 %v390, %v413
        %v429 = vmul.f32 %v391, %v417
        %v430 = vld [vmem:[%s4] sm:$0x3f]
        %v432 = vlaneseq
        %v433 = vshrl.u32 %v432, 7
        %v434 = vsub.s32 0, %v433
        %v435 = vrot.slane %v430, %v434
        %v436 = vlaneseq
        %v437 = vshrl.u32 %v436, 7
        %v438 = vsub.s32 1, %v437
        %v439 = vrot.slane %v430, %v438
        %v440 = vlaneseq
        %v441 = vshrl.u32 %v440, 7
        %v442 = vsub.s32 2, %v441
        %v443 = vrot.slane %v430, %v442
        %v444 = vlaneseq
        %v445 = vshrl.u32 %v444, 7
        %v446 = vsub.s32 3, %v445
        %v447 = vrot.slane %v430, %v446
        %v448 = vlaneseq
        %v449 = vshrl.u32 %v448, 7
        %v450 = vsub.s32 4, %v449
        %v451 = vrot.slane %v430, %v450
        %v452 = vlaneseq
        %v453 = vshrl.u32 %v452, 7
        %v454 = vsub.s32 5, %v453
        %v455 = vrot.slane %v430, %v454
        %v462 = vadd.f32 %v424, %v435
        %v463 = vadd.f32 %v425, %v439
        %v464 = vadd.f32 %v426, %v443
        %v465 = vadd.f32 %v427, %v447
        %v466 = vadd.f32 %v428, %v451
        %v467 = vadd.f32 %v429, %v455
        %v468 = vpack.c.bf16 %v462, %v462
        %v469 = vpack.c.bf16 %v463, %v463
        %v470 = vpack.c.bf16 %v464, %v464
        %v471 = vpack.c.bf16 %v465, %v465
        %v472 = vpack.c.bf16 %v466, %v466
        %v473 = vpack.c.bf16 %v467, %v467
        %v480 = vunpack.c.l.b16 %v468
        %v481 = vunpack.c.l.b16 %v469
        %v482 = vunpack.c.l.b16 %v470
        %v483 = vunpack.c.l.b16 %v471
        %v484 = vunpack.c.l.b16 %v472
        %v485 = vunpack.c.l.b16 %v473
        %v486 = vpack.c.b16 %v481, %v480
        %v487 = vpack.c.b16 %v483, %v482
        %v488 = vpack.c.b16 %v485, %v484
        %492 = vst [vmem:[%s265] sm:$0xff] %v486
        %493 = vst [vmem:[%s265 + $0x8] sm:$0xff] %v487
        %494 = vst [vmem:[%s265 + $0x10] sm:$0xff] %v488
        %s495 = sand.u32 %s141, 1
        %s496 = scalar_lea.sflag [#allocation4], %s495
        %s497 = sand.u32 %s141, 1
        %s498 = smul.addr %s497, 24
        %s499 = scalar_lea.vmem [#allocation8], %s498
        // Predicated region
        $region53: #{tpu_custom_call.1} parent=39 // pred_check
          %p500 = pneg %p151
        $region54: #{tpu_custom_call.1} parent=39 // pred_check_branch
          %502 = sbr.rel (%p500) target = $region56
        $region55: #{tpu_custom_call.1} parent=39 // pred_region
          %s504 = ssub.s32 384, 384
          %505 = vsyncadd %s496, %s504
          %s506 = smul.addr %s23, 6
          %s507 = smul.addr %s506, 64
          %s508 = scalar_lea.hbm %s5, %s507
          %s510 = sshll.u32 %s499, 4
          %s511 = int_to_ptr.vmem [resolvable:$true] %s510
          %513 = dma.vmem_to_hbm [thread:$0]  %s511, 384, %s508, %s496
        $region56: #{tpu_custom_call.1} parent=39 // pred_fallthru
          _
      $region40: #{tpu_custom_call.1} parent=5 // pred_fallthru
        _
      %p514 = scmp.le.s32.totalorder 2, %s18
      // Predicated region
      $region57: #{tpu_custom_call.1} parent=5 // pred_check
        %p515 = pneg %p514
      $region58: #{tpu_custom_call.1} parent=5 // pred_check_branch
        %517 = sbr.rel (%p515) target = $region60
      $region59: #{tpu_custom_call.1} parent=5 // pred_region
        %s518 = ssub.s32 %s18, 2
        // Predicated region
        $region61: #{tpu_custom_call.1} parent=59 // pred_check
          %p519 = pneg %p157
        $region62: #{tpu_custom_call.1} parent=59 // pred_check_branch
          %521 = sbr.rel (%p519) target = $region64
        $region63: #{tpu_custom_call.1} parent=59 // pred_region
          %s522 = sand.u32 %s142, 1
          %s523 = scalar_lea.sflag [#allocation4], %s522
          %s524 = sand.u32 %s142, 1
          %s525 = smul.addr %s524, 24
          %s526 = scalar_lea.vmem [#allocation8], %s525
          %527 = dma.done %s523, 384
        $region64: #{tpu_custom_call.1} parent=59 // pred_fallthru
          _
      $region60: #{tpu_custom_call.1} parent=5 // pred_fallthru
        _
    $region6: #{tpu_custom_call.1} parent=1 // loop_footer
      %s22 = sadd.s32 1, %s18
    $region7: #{tpu_custom_call.1} parent=1 // loop_footer_branch
      %17 = sbr.rel target = $region3
    $region8: #{tpu_custom_call.1} parent=1 // loop_exit
      _
    %528 = vsyncpa [#allocation3], 1
    %s529 = scalar_lea.sflag [#allocation3], 1
    %530 = vsyncpa %s529, 1
    %531 = vsyncpa [#allocation6], 1
    %532 = vsyncpa [#allocation4], 1
    %s533 = scalar_lea.sflag [#allocation4], 1
    %534 = vsyncpa %s533, 1

</llo_original>
